<compile_context>
chip_gen: v6e
topology: v6e:2x2x1
jax: 0.10.0
libtpu: 0.0.40
codegen_flags: <defaults>
</compile_context>

<pallas_src>
import jax
import jax.numpy as jnp
from jax import lax
from jax.experimental import pallas as pl
from jax.experimental.pallas import tpu as pltpu


def _round_up(x, m):
    return (x + m - 1) // m * m


def _pick_divisor_tile(dim, target, base):
    """Largest multiple of `base` that divides `dim` and is <= max(target, base).

    `dim` must already be a multiple of `base`, so the search always succeeds
    (worst case returns `base`).  Runs at trace time only.
    """
    t = min(max((target // base) * base, base), dim)
    while t > base and dim % t != 0:
        t -= base
    return t


def _device_targets():
    """Generation-tuned MXU-shaped tile targets (tm, tn, tk)."""
    try:
        kind = jax.devices()[0].device_kind.lower()
    except Exception:  # pragma: no cover - defensive
        kind = ""
    if ("v5e" in kind) or ("v5 lite" in kind) or ("v5lite" in kind):
        # v5e: 4x128x128 MXU, ~0.8 TB/s HBM -> modest tiles, deeper K.
        return 256, 256, 512
    # v6e / v7x: 2x256x256 MXU -> 256-multiple tiles.  Double-buffered VMEM
    # footprint of this config is ~4-5 MiB, well under the scoped default on
    # every generation (incl. v7x's 64 MiB physical VMEM).
    return 256, 512, 1024


# --------------------------------------------------------------------------
# Small-problem path: single grid point, everything resident in VMEM.
# --------------------------------------------------------------------------
def _linear_small_kernel(x_ref, w_ref, b_ref, o_ref):
    # x: [M, K], w: [N, K]  ->  NT GEMM, fp32 accumulate on the MXU.
    acc = lax.dot_general(
        x_ref[...], w_ref[...],
        dimension_numbers=(((1,), (1,)), ((), ())),
        preferred_element_type=jnp.float32,
    )
    o_ref[...] = (acc + b_ref[...].astype(jnp.float32)).astype(o_ref.dtype)


# --------------------------------------------------------------------------
# Tiled path: (tm, tn) output tile, K-reduction as the last ("arbitrary") axis.
# --------------------------------------------------------------------------
def _linear_tiled_kernel(x_ref, w_ref, b_ref, o_ref, acc_ref):
    k = pl.program_id(2)

    @pl.when(k == 0)
    def _():
        # Fold the bias into the accumulator init (no separate epilogue add).
        acc_ref[...] = jnp.broadcast_to(
            b_ref[...].astype(jnp.float32), acc_ref.shape
        )

    # x tile [tm, tk] x weight tile [tn, tk]  ->  [tm, tn]   (NT GEMM)
    acc_ref[...] += lax.dot_general(
        x_ref[...], w_ref[...],
        dimension_numbers=(((1,), (1,)), ((), ())),
        preferred_element_type=jnp.float32,
    )

    @pl.when(k == pl.num_programs(2) - 1)
    def _():
        o_ref[...] = acc_ref[...].astype(o_ref.dtype)


@jax.jit
def linear_wrapper_forward(x, weight, bias=None):
    """out = x @ weight.T + bias  (activation='NONE'), matching CublasLinear.apply.

    x: [..., K]; weight: [N, K] (out_features, in_features); bias: [N] or None.
    Returns [..., N] in x.dtype.
    """
    lead_shape = x.shape[:-1]
    K = x.shape[-1]
    N, K2 = weight.shape
    assert K == K2, "in_features mismatch"

    x2d = x.reshape(-1, K)
    M = x2d.shape[0]

    if bias is None:
        bias = jnp.zeros((N,), weight.dtype)
    b2 = bias.reshape(1, N)

    # ---- small-problem fast path: one block, no pipelined grid -------------
    approx_bytes = x.dtype.itemsize * (M * K + N * K + M * N + N)
    if approx_bytes <= (2 << 20):
        out = pl.pallas_call(
            _linear_small_kernel,
            out_shape=jax.ShapeDtypeStruct((M, N), x.dtype),
            in_specs=[pl.BlockSpec(memory_space=pltpu.MemorySpace.VMEM)] * 3,
            out_specs=pl.BlockSpec(memory_space=pltpu.MemorySpace.VMEM),
        )(x2d, weight, b2)
        return out.reshape(lead_shape + (N,))

    # ---- tiled path ---------------------------------------------------------
    tgt_m, tgt_n, tgt_k = _device_targets()

    # N / K: align to 128 lanes (pad the weight only when strictly required),
    # then pick tiles that divide the aligned extent -> no HBM weight copy for
    # the common case of 128-multiple shapes.
    Np = _round_up(N, 128)
    Kp = _round_up(K, 128)
    tn = _pick_divisor_tile(Np, tgt_n, 128)
    tk = _pick_divisor_tile(Kp, tgt_k, 128)

    # M: keep full MXU-height LHS tiles; padding x along M is cheap.
    base_m = 8 * max(1, 4 // x.dtype.itemsize)     # 8 for f32, 16 for bf16
    tm = min(tgt_m, _round_up(M, base_m))
    Mp = _round_up(M, tm)

    xp = x2d if (Mp == M and Kp == K) else jnp.pad(
        x2d, ((0, Mp - M), (0, Kp - K)))
    wp = weight if (Np == N and Kp == K) else jnp.pad(
        weight, ((0, Np - N), (0, Kp - K)))
    bp = b2 if Np == N else jnp.pad(b2, ((0, 0), (0, Np - N)))

    grid = (Mp // tm, Np // tn, Kp // tk)

    itemsize = x.dtype.itemsize
    cost = pl.CostEstimate(
        flops=2 * Mp * Np * Kp,
        transcendentals=0,
        bytes_accessed=(Mp * Kp + Np * Kp + Np + Mp * Np) * itemsize,
    )

    out = pl.pallas_call(
        _linear_tiled_kernel,
        out_shape=jax.ShapeDtypeStruct((Mp, Np), x.dtype),
        grid_spec=pltpu.PrefetchScalarGridSpec(
            num_scalar_prefetch=0,
            grid=grid,
            in_specs=[
                pl.BlockSpec((tm, tk), lambda i, j, k: (i, k)),  # x tile  [M,K]
                pl.BlockSpec((tn, tk), lambda i, j, k: (j, k)),  # weight  [N,K]
                pl.BlockSpec((1, tn), lambda i, j, k: (0, j)),   # bias tile
            ],
            out_specs=pl.BlockSpec((tm, tn), lambda i, j, k: (i, j)),
            scratch_shapes=[pltpu.VMEM((tm, tn), jnp.float32)],
        ),
        compiler_params=pltpu.CompilerParams(
            dimension_semantics=("parallel", "parallel", "arbitrary")
        ),
        cost_estimate=cost,
    )(xp, wp, bp)

    if Mp != M or Np != N:
        out = out[:M, :N]
    return out.reshape(lead_shape + (N,))


if __name__ == "__main__":
    key = jax.random.PRNGKey(0)

    # ---- test 1: small Linear forward (single-block fast path) -------------
    batch, in_features, out_features = 8, 128, 128
    kx, kw, kb = jax.random.split(key, 3)
    x = jax.random.normal(kx, (batch, in_features), jnp.float32).astype(jnp.bfloat16)
    w = (jax.random.normal(kw, (out_features, in_features), jnp.float32) * 0.05
         ).astype(jnp.bfloat16)
    b = (jax.random.normal(kb, (out_features,), jnp.float32) * 0.1
         ).astype(jnp.bfloat16)

    out = jax.block_until_ready(linear_wrapper_forward(x, w, b))
    ref = (jnp.dot(x.astype(jnp.float32), w.astype(jnp.float32).T)
           + b.astype(jnp.float32))
    assert out.shape == (batch, out_features) and out.dtype == jnp.bfloat16
    err = jnp.max(jnp.abs(out.astype(jnp.float32) - ref))
    assert err < 5e-2, f"small-path max abs error {err}"

    # ---- test 2: tiled path, non-tile-target-divisible N (768 -> tn=384) ---
    M2, K2, N2 = 256, 2048, 768
    k2x, k2w, k2b = jax.random.split(jax.random.PRNGKey(1), 3)
    x2 = jax.random.normal(k2x, (M2, K2), jnp.float32).astype(jnp.bfloat16)
    w2 = (jax.random.normal(k2w, (N2, K2), jnp.float32) * 0.05).astype(jnp.bfloat16)
    b2 = (jax.random.normal(k2b, (N2,), jnp.float32) * 0.1).astype(jnp.bfloat16)

    out2 = jax.block_until_ready(linear_wrapper_forward(x2, w2, b2))
    ref2 = (jnp.dot(x2.astype(jnp.float32), w2.astype(jnp.float32).T)
            + b2.astype(jnp.float32))
    assert out2.shape == (M2, N2) and out2.dtype == jnp.bfloat16
    err2 = jnp.max(jnp.abs(out2.astype(jnp.float32) - ref2))
    assert err2 < 1e-1, f"tiled-path max abs error {err2}"

    # ---- test 3: N-D activation input (flattened leading batch dims) -------
    k3x, k3w, k3b = jax.random.split(jax.random.PRNGKey(2), 3)
    x3 = jax.random.normal(k3x, (2, 4, 256), jnp.float32).astype(jnp.bfloat16)
    w3 = (jax.random.normal(k3w, (128, 256), jnp.float32) * 0.05).astype(jnp.bfloat16)
    b3 = (jax.random.normal(k3b, (128,), jnp.float32) * 0.1).astype(jnp.bfloat16)
    out3 = jax.block_until_ready(linear_wrapper_forward(x3, w3, b3))
    ref3 = (jnp.einsum("bsk,nk->bsn", x3.astype(jnp.float32), w3.astype(jnp.float32))
            + b3.astype(jnp.float32))
    assert out3.shape == (2, 4, 128) and out3.dtype == jnp.bfloat16
    err3 = jnp.max(jnp.abs(out3.astype(jnp.float32) - ref3))
    assert err3 < 5e-2, f"ND-path max abs error {err3}"

    print("KERNEL_OK")
</pallas_src>

<mosaic_0001>
module attributes {stable_mosaic.version = 11 : i64} {
  func.func @_linear_small_kernel(%arg0: memref<8x128xbf16, #tpu.memory_space<vmem>>, %arg1: memref<128x128xbf16, #tpu.memory_space<vmem>>, %arg2: memref<1x128xbf16, #tpu.memory_space<vmem>>, %arg3: memref<8x128xbf16, #tpu.memory_space<vmem>>) attributes {dimension_semantics = [], scalar_prefetch = 0 : i64, scratch_operands = 0 : i64, tpu.core_type = #tpu.core_type<tc>} {
    %c0 = arith.constant 0 : index
    %c0_0 = arith.constant 0 : index
    %0 = vector.load %arg0[%c0, %c0_0] : memref<8x128xbf16, #tpu.memory_space<vmem>>, vector<8x128xbf16>
    %c0_1 = arith.constant 0 : index
    %c0_2 = arith.constant 0 : index
    %1 = vector.load %arg1[%c0_1, %c0_2] : memref<128x128xbf16, #tpu.memory_space<vmem>>, vector<128x128xbf16>
    %cst = arith.constant dense<0.000000e+00> : vector<8x128xf32>
    %2 = tpu.matmul %0, %1, %cst {dimension_numbers = #tpu.dot_dimension_numbers<[1], [1], [0], [0], [0, 0, 1, 0], [], []>} : vector<8x128xbf16>, vector<128x128xbf16>, vector<8x128xf32> -> vector<8x128xf32>
    %c0_3 = arith.constant 0 : index
    %c0_4 = arith.constant 0 : index
    %3 = vector.load %arg2[%c0_3, %c0_4] : memref<1x128xbf16, #tpu.memory_space<vmem>>, vector<1x128xbf16>
    %4 = arith.extf %3 : vector<1x128xbf16> to vector<1x128xf32>
    %5 = vector.broadcast %4 : vector<1x128xf32> to vector<8x128xf32>
    %6 = arith.addf %2, %5 : vector<8x128xf32>
    %7 = arith.truncf %6 : vector<8x128xf32> to vector<8x128xbf16>
    %c0_5 = arith.constant 0 : index
    %c0_6 = arith.constant 0 : index
    %8 = vector.load %arg3[%c0_5, %c0_6] : memref<8x128xbf16, #tpu.memory_space<vmem>>, vector<8x128xbf16>
    tpu.vector_store %arg3[%c0_5, %c0_6], %7 {strides = array<i32>} : memref<8x128xbf16, #tpu.memory_space<vmem>>, vector<8x128xbf16>,
    return
  }
}

</mosaic_0001>

<llo_original>
// kernel: linear_wrapper_forward.1
$region0: #{linear_wrapper_forward.1}
  #allocation0 [shape = 'u32[]', space=smem, size = 0x4, offset = 0x4, fixed_abs, tag = 'smem constant byte address 0x4 - core index']
  #allocation1 [shape = 'u32[144,128]{1,0:T(1,128)}', space=vmem, size = 0x12000, scoped, tag = 'internal scratch']
  %s0 = inlined_call_operand.hbm [shape: bf16[8,128], index: 0, kind: input, shape index: {}]
  %s1 = inlined_call_operand.hbm [shape: bf16[128,128], index: 1, kind: input, shape index: {}]
  %s2 = inlined_call_operand.vmem [shape: bf16[1,128], index: 2, kind: input, shape index: {}]
  %s3 = inlined_call_operand.hbm [shape: bf16[8,128], index: 3, kind: output, shape index: {}]
  %s4 = sld [smem:[#allocation0]]
  $region30: #{linear_wrapper_forward.1} parent=0
    _
  %s6 = ssub.s32 1, %s4
  %s7 = scalar_select 0, %s6, %s4
  $region1: #{linear_wrapper_forward.1} parent=0
    #allocation2 [shape = 'u8[2048]{0}', space=vmem, size = 0x800, scoped, tag = 'input window, operand 0, single buffered']
    #allocation3 [shape = 's32[1]{0}', space=sflag, size = 0x4, scoped, tag = 'scoped memory for linear_wrapper_forward.1']
    #allocation4 [shape = 's32[1]{0}', space=sflag, size = 0x4, scoped, tag = 'scoped memory for linear_wrapper_forward.1']
    #allocation5 [shape = 'u8[32768]{0}', space=vmem, size = 0x8000, scoped, tag = 'input window, operand 1, single buffered']
    #allocation6 [shape = 's32[1]{0}', space=sflag, size = 0x4, scoped, tag = 'scoped memory for linear_wrapper_forward.1']
    #allocation7 [shape = 'u8[2048]{0}', space=vmem, size = 0x800, scoped, tag = 'output window, operand 0, single buffered']
    %8 = vsyncpa [#allocation3], 0
    %9 = vsyncpa [#allocation6], 0
    %10 = vsyncpa [#allocation4], 0
    // Predicated region
    $region2: #{linear_wrapper_forward.1} parent=1 // pred_check
      _
    $region3: #{linear_wrapper_forward.1} parent=1 // pred_check_branch
      %12 = sbr.rel (0) target = $region5
    $region4: #{linear_wrapper_forward.1} parent=1 // pred_region
      %s14 = ssub.s32 64, 64
      %15 = vsyncadd [#allocation3], %s14
      %s17 = sshll.u32 [#allocation2], 4
      %s18 = int_to_ptr.vmem [resolvable:$true] %s17
      %20 = dma.hbm_to_vmem [thread:$0]  %s0, 64, %s18, [#allocation3]
    $region5: #{linear_wrapper_forward.1} parent=1 // pred_fallthru
      _
    // Predicated region
    $region6: #{linear_wrapper_forward.1} parent=1 // pred_check
      _
    $region7: #{linear_wrapper_forward.1} parent=1 // pred_check_branch
      %22 = sbr.rel (0) target = $region9
    $region8: #{linear_wrapper_forward.1} parent=1 // pred_region
      %s24 = ssub.s32 1024, 1024
      %25 = vsyncadd [#allocation6], %s24
      %s26 = sshll.u32 [#allocation5], 4
      %s27 = int_to_ptr.vmem [resolvable:$true] %s26
      %32 = dma.hbm_to_vmem [thread:$0]  %s1, 1024, %s27, [#allocation6], 64, 64, 4
    $region9: #{linear_wrapper_forward.1} parent=1 // pred_fallthru
      _
    // Predicated region
    $region10: #{linear_wrapper_forward.1} parent=1 // pred_check
      _
    $region11: #{linear_wrapper_forward.1} parent=1 // pred_check_branch
      %34 = sbr.rel (0) target = $region13
    $region12: #{linear_wrapper_forward.1} parent=1 // pred_region
      _
    $region13: #{linear_wrapper_forward.1} parent=1 // pred_fallthru
      _
    // Predicated region
    $region14: #{linear_wrapper_forward.1} parent=1 // pred_check
      _
    $region15: #{linear_wrapper_forward.1} parent=1 // pred_check_branch
      %36 = sbr.rel (0) target = $region17
    $region16: #{linear_wrapper_forward.1} parent=1 // pred_region
      %37 = dma.done [#allocation3], 64
    $region17: #{linear_wrapper_forward.1} parent=1 // pred_fallthru
      _
    // Predicated region
    $region18: #{linear_wrapper_forward.1} parent=1 // pred_check
      _
    $region19: #{linear_wrapper_forward.1} parent=1 // pred_check_branch
      %39 = sbr.rel (0) target = $region21
    $region20: #{linear_wrapper_forward.1} parent=1 // pred_region
      %40 = dma.done [#allocation6], 1024
    $region21: #{linear_wrapper_forward.1} parent=1 // pred_fallthru
      _
    %v42 = vld [vmem:[#allocation2] sm:$0xf]
    %v43 = vld [vmem:[#allocation5] sm:$0xf]
    %v44 = vld [vmem:[#allocation5 + $0x4] sm:$0xf]
    %v45 = vld [vmem:[#allocation5 + $0x8] sm:$0xf]
    %v46 = vld [vmem:[#allocation5 + $0xc] sm:$0xf]
    %v47 = vld [vmem:[#allocation5 + $0x10] sm:$0xf]
    %v48 = vld [vmem:[#allocation5 + $0x14] sm:$0xf]
    %v49 = vld [vmem:[#allocation5 + $0x18] sm:$0xf]
    %v50 = vld [vmem:[#allocation5 + $0x1c] sm:$0xf]
    %v51 = vld [vmem:[#allocation5 + $0x20] sm:$0xf]
    %v52 = vld [vmem:[#allocation5 + $0x24] sm:$0xf]
    %v53 = vld [vmem:[#allocation5 + $0x28] sm:$0xf]
    %v54 = vld [vmem:[#allocation5 + $0x2c] sm:$0xf]
    %v55 = vld [vmem:[#allocation5 + $0x30] sm:$0xf]
    %v56 = vld [vmem:[#allocation5 + $0x34] sm:$0xf]
    %v57 = vld [vmem:[#allocation5 + $0x38] sm:$0xf]
    %v58 = vld [vmem:[#allocation5 + $0x3c] sm:$0xf]
    %v59 = vld [vmem:[%s2] sm:$0x1]
    %v60 = vunpack.c.l.bf16 %v59
    %v61 = vlaneseq
    %v62 = vshrl.u32 %v61, 7
    %v63 = vsub.s32 0, %v62
    %v64 = vrot.slane %v60, %v63
    %v81 = vunpack.c.l.b16 %v43
    %v82 = vunpack.c.l.b16 %v44
    %v83 = vunpack.c.l.b16 %v45
    %v84 = vunpack.c.l.b16 %v46
    %v85 = vunpack.c.l.b16 %v47
    %v86 = vunpack.c.l.b16 %v48
    %v87 = vunpack.c.l.b16 %v49
    %v88 = vunpack.c.l.b16 %v50
    %v89 = vunpack.c.l.b16 %v51
    %v90 = vunpack.c.l.b16 %v52
    %v91 = vunpack.c.l.b16 %v53
    %v92 = vunpack.c.l.b16 %v54
    %v93 = vunpack.c.l.b16 %v55
    %v94 = vunpack.c.l.b16 %v56
    %v95 = vunpack.c.l.b16 %v57
    %v96 = vunpack.c.l.b16 %v58
    %v97 = vpack.c.b16 %v82, %v81
    %v98 = vpack.c.b16 %v84, %v83
    %v99 = vpack.c.b16 %v86, %v85
    %v100 = vpack.c.b16 %v88, %v87
    %v101 = vpack.c.b16 %v90, %v89
    %v102 = vpack.c.b16 %v92, %v91
    %v103 = vpack.c.b16 %v94, %v93
    %v104 = vpack.c.b16 %v96, %v95
    %113 = vmatprep.subr.bf16.mxu0 0
    %114 = vmatpush1.bf16.xpose.msra.mxu0 %v104
    %115 = vmatprep.subr.bf16.mxu0 0
    %116 = vmatpush1.bf16.xpose.msra.mxu0 %v103
    %117 = vmatprep.subr.bf16.mxu0 0
    %118 = vmatpush1.bf16.xpose.msra.mxu0 %v102
    %119 = vmatprep.subr.bf16.mxu0 0
    %120 = vmatpush1.bf16.xpose.msra.mxu0 %v101
    %121 = vmatprep.subr.bf16.mxu0 0
    %122 = vmatpush1.bf16.xpose.msra.mxu0 %v100
    %123 = vmatprep.subr.bf16.mxu0 0
    %124 = vmatpush1.bf16.xpose.msra.mxu0 %v99
    %125 = vmatprep.subr.bf16.mxu0 0
    %126 = vmatpush1.bf16.xpose.msra.mxu0 %v98
    %127 = vmatprep.subr.bf16.mxu0 0
    %128 = vmatpush1.bf16.xpose.msra.mxu0 %v97
    %129 = vmatprep.subr.bf16.mxu0 0
    %130 = vmatpush2.bf16.xpose.msra.mxu0 0
    %131 = vmatprep.subr.bf16.mxu0 0
    %132 = vmatpush2.bf16.xpose.msra.mxu0 0
    %133 = vmatprep.subr.bf16.mxu0 0
    %134 = vmatpush2.bf16.xpose.msra.mxu0 0
    %135 = vmatprep.subr.bf16.mxu0 0
    %136 = vmatpush2.bf16.xpose.msra.mxu0 0
    %137 = vmatprep.subr.bf16.mxu0 0
    %138 = vmatpush2.bf16.xpose.msra.mxu0 0
    %139 = vmatprep.subr.bf16.mxu0 0
    %140 = vmatpush2.bf16.xpose.msra.mxu0 0
    %141 = vmatprep.subr.bf16.mxu0 0
    %142 = vmatpush2.bf16.xpose.msra.mxu0 0
    %143 = vmatprep.subr.bf16.mxu0 0
    %144 = vmatpush2.bf16.xpose.msra.mxu0 0
    %145 = vmatprep.mubr.bf16.mxu0 0
    %146 = vmatmul.mubr.bf16.gmra.mxu0 %v42
    %v147 = vpop.f32.mrf.mxu0
    %v148 = vadd.f32 %v64, %v147
    %v149 = vpop.f32.mrf.mxu0
    %v150 = vpop.f32.mrf.mxu0
    %v151 = vpop.f32.mrf.mxu0
    %152 = vdwg.mxu0
    %v153 = vpack.c.bf16 %v148, %v148
    %154 = vst [vmem:[#allocation7] sm:$0xf] %v153
    // Predicated region
    $region22: #{linear_wrapper_forward.1} parent=1 // pred_check
      _
    $region23: #{linear_wrapper_forward.1} parent=1 // pred_check_branch
      %156 = sbr.rel (0) target = $region25
    $region24: #{linear_wrapper_forward.1} parent=1 // pred_region
      %s158 = ssub.s32 64, 64
      %159 = vsyncadd [#allocation4], %s158
      %s161 = sshll.u32 [#allocation7], 4
      %s162 = int_to_ptr.vmem [resolvable:$true] %s161
      %164 = dma.vmem_to_hbm [thread:$0]  %s162, 64, %s3, [#allocation4]
    $region25: #{linear_wrapper_forward.1} parent=1 // pred_fallthru
      _
    // Predicated region
    $region26: #{linear_wrapper_forward.1} parent=1 // pred_check
      _
    $region27: #{linear_wrapper_forward.1} parent=1 // pred_check_branch
      %166 = sbr.rel (0) target = $region29
    $region28: #{linear_wrapper_forward.1} parent=1 // pred_region
      %167 = dma.done [#allocation4], 64
    $region29: #{linear_wrapper_forward.1} parent=1 // pred_fallthru
      _
    %168 = vsyncpa [#allocation3], 1
    %169 = vsyncpa [#allocation6], 1
    %170 = vsyncpa [#allocation4], 1

</llo_original>
